<compile_context>
chip_gen: v7x
topology: tpu7x:2x2x1
jax: 0.10.0
libtpu: 0.0.40
codegen_flags: <defaults>
</compile_context>

<pallas_src>
import functools

import jax
import jax.numpy as jnp
from jax.experimental import pallas as pl
from jax.experimental.pallas import tpu as pltpu


def _lambd(x):
    """Concrete `lambd` applied by the Lambda module (elementwise affine)."""
    return x * 2.0 + 1.0


def _lambda_kernel(x_ref, o_ref):
    # Elementwise lambda on the VMEM tile (VPU path).  The explicit cast keeps
    # the store dtype-correct even if the lambda promotes (e.g. bf16 inputs).
    o_ref[...] = _lambd(x_ref[...]).astype(o_ref.dtype)


_LANE_CHOICES = (512, 256, 128)       # lane-dense widths (multiples of 128)
_BLOCK_BYTES = 4 * 1024 * 1024        # ~4 MiB/block; in+out double-buffered ~16 MiB
_VMEM_LIMIT_BYTES = 48 * 1024 * 1024  # > scoped defaults everywhere, < v7x's 64 MiB physical
_SMALL_INPUT_BYTES = 256 * 1024       # below this, fused plain-JAX wins


def _round_up(n, m):
    return ((n + m - 1) // m) * m


@functools.partial(jax.jit, static_argnames=("small_input_bytes",))
def lambda_forward(x, *, small_input_bytes=_SMALL_INPUT_BYTES):
    """Lambda.forward(x) == lambd(x); elementwise hot path in a Pallas TPU kernel."""
    orig_shape = x.shape
    dtype = x.dtype
    total = int(x.size)
    itemsize = jnp.dtype(dtype).itemsize

    # Fast path: tiny tensors are cheaper as a fused XLA elementwise op.
    if total == 0 or total * itemsize <= small_input_bytes:
        return _lambd(x).astype(dtype)

    # Native sublane packing for float dtypes: f32 -> 8, bf16/f16 -> 16.
    sublane = {4: 8, 2: 16}.get(itemsize, 8)

    # Pick the widest lane count that divides the element count so the common
    # case needs no padding at all (a flat reshape is free under jit).
    lanes = None
    for cand in _LANE_CHOICES:
        if total % cand == 0:
            lanes = cand
            break
    if lanes is None:
        lanes = _LANE_CHOICES[0]

    padded_total = _round_up(total, lanes)
    x_flat = x.reshape(-1)
    if padded_total != total:
        # TODO(synk): this pad (and the matching slice below) is an extra HBM
        # round trip; a remainder-in-plain-JAX split would avoid it for the
        # rare element counts that are not a multiple of 128.
        x_flat = jnp.pad(x_flat, (0, padded_total - total))
    rows = padded_total // lanes
    x2d = x_flat.reshape(rows, lanes)

    # Row tile: as large as the VMEM budget allows, but small enough that the
    # grid has >= 2 blocks (so "parallel" can feed both v7x TensorCores).
    target_rows = max(sublane, (_BLOCK_BYTES // (lanes * itemsize)) // sublane * sublane)
    split_rows = _round_up(-(-rows // 2), sublane)
    tile_rows = min(target_rows, split_rows)
    # For tiny row counts use one full-height block (block == full array dim is
    # always legal and avoids any partially-out-of-bounds first block).
    tile_rows = min(tile_rows, rows)

    grid = (pl.cdiv(rows, tile_rows),)  # ragged last block is masked by Pallas

    out2d = pl.pallas_call(
        _lambda_kernel,
        out_shape=jax.ShapeDtypeStruct((rows, lanes), dtype),
        grid_spec=pltpu.PrefetchScalarGridSpec(
            num_scalar_prefetch=0,
            grid=grid,
            in_specs=[pl.BlockSpec((tile_rows, lanes), lambda i: (i, 0))],
            out_specs=pl.BlockSpec((tile_rows, lanes), lambda i: (i, 0)),
        ),
        compiler_params=pltpu.CompilerParams(
            dimension_semantics=("parallel",),
            vmem_limit_bytes=_VMEM_LIMIT_BYTES,
        ),
        cost_estimate=pl.CostEstimate(
            flops=2 * padded_total,
            transcendentals=0,
            bytes_accessed=2 * padded_total * itemsize,
        ),
    )(x2d)

    out_flat = out2d.reshape(-1)
    if padded_total != total:
        out_flat = out_flat[:total]
    return out_flat.reshape(orig_shape)


if __name__ == "__main__":
    key = jax.random.PRNGKey(0)
    k1, k2, k3 = jax.random.split(key, 3)

    # 1) Small NCHW input (module-consistent shape), forced through the Pallas path.
    x_small = jax.random.normal(k1, (2, 4, 16, 16), dtype=jnp.float32)
    out_small = jax.block_until_ready(lambda_forward(x_small, small_input_bytes=0))
    assert out_small.shape == x_small.shape and out_small.dtype == x_small.dtype
    assert jnp.allclose(out_small, _lambd(x_small), atol=1e-6, rtol=1e-6)

    # 2) Ragged element count (not a multiple of 128 lanes) through the Pallas path.
    x_ragged = jax.random.normal(k2, (3, 5, 7, 11), dtype=jnp.float32)
    out_ragged = jax.block_until_ready(lambda_forward(x_ragged, small_input_bytes=0))
    assert jnp.allclose(out_ragged, _lambd(x_ragged), atol=1e-6, rtol=1e-6)

    # 3) Mid-size input takes the Pallas path by default with a >= 2-block grid.
    x_mid = jax.random.normal(k3, (4, 8, 32, 128), dtype=jnp.float32)
    out_mid = jax.block_until_ready(lambda_forward(x_mid))
    assert jnp.allclose(out_mid, _lambd(x_mid), atol=1e-6, rtol=1e-6)

    # 4) bf16 coverage (kernel casts the result back to the output dtype).
    x_bf16 = x_small.astype(jnp.bfloat16)
    out_bf16 = jax.block_until_ready(lambda_forward(x_bf16, small_input_bytes=0))
    assert out_bf16.dtype == jnp.bfloat16
    assert jnp.allclose(out_bf16.astype(jnp.float32),
                        _lambd(x_bf16).astype(jnp.float32), atol=1e-2, rtol=1e-2)

    # 5) Default threshold: tiny input goes through the fused plain-JAX fast path.
    out_fast = jax.block_until_ready(lambda_forward(x_small))
    assert jnp.allclose(out_fast, _lambd(x_small), atol=1e-6, rtol=1e-6)

    print("KERNEL_OK")
</pallas_src>

<mosaic_0001>
module attributes {stable_mosaic.version = 11 : i64} {
  func.func @_lambda_kernel(%arg0: i32, %arg1: memref<4x512xf32, #tpu.memory_space<vmem>>, %arg2: memref<4x512xf32, #tpu.memory_space<vmem>>) attributes {dimension_semantics = [#tpu.dimension_semantics<parallel>], iteration_bounds = array<i64: 1>, scalar_prefetch = 0 : i64, scratch_operands = 0 : i64, tpu.core_type = #tpu.core_type<tc>, window_params = [{transform_indices = @transform_0, window_bounds = array<i64: 4, 512>}, {transform_indices = @transform_1, window_bounds = array<i64: 4, 512>}]} {
    %c0 = arith.constant 0 : index
    %c0_0 = arith.constant 0 : index
    %0 = vector.load %arg1[%c0, %c0_0] : memref<4x512xf32, #tpu.memory_space<vmem>>, vector<4x512xf32>
    %cst = arith.constant 2.000000e+00 : f32
    %1 = vector.broadcast %cst : f32 to vector<4x512xf32>
    %2 = arith.mulf %0, %1 : vector<4x512xf32>
    %cst_1 = arith.constant 1.000000e+00 : f32
    %3 = vector.broadcast %cst_1 : f32 to vector<4x512xf32>
    %4 = arith.addf %2, %3 : vector<4x512xf32>
    %c0_2 = arith.constant 0 : index
    %c0_3 = arith.constant 0 : index
    %5 = vector.load %arg2[%c0_2, %c0_3] : memref<4x512xf32, #tpu.memory_space<vmem>>, vector<4x512xf32>
    tpu.vector_store %arg2[%c0_2, %c0_3], %4 {strides = array<i32>} : memref<4x512xf32, #tpu.memory_space<vmem>>, vector<4x512xf32>,
    return
  }
  func.func @transform_0(%arg0: i32) -> (i32, i32) {
    %c0_i32 = arith.constant 0 : i32
    %c0_i32_0 = arith.constant 0 : i32
    return %arg0, %c0_i32 : i32, i32
  }
  func.func @transform_1(%arg0: i32) -> (i32, i32) {
    %c0_i32 = arith.constant 0 : i32
    %c0_i32_0 = arith.constant 0 : i32
    return %arg0, %c0_i32 : i32, i32
  }
}

</mosaic_0001>

<llo_original>
// kernel: lambda_forward.1
$region0: #{lambda_forward.1}
  #allocation0 [shape = 'u32[]', space=smem, size = 0x4, offset = 0x4, fixed_abs, tag = 'smem constant byte address 0x4 - core index']
  #allocation1 [shape = 'u32[144,128]{1,0:T(1,128)}', space=vmem, size = 0x12000, scoped, tag = 'internal scratch']
  %s0 = inlined_call_operand.vmem [shape: f32[4,512], index: 0, kind: input, shape index: {}]
  %s1 = inlined_call_operand.vmem [shape: f32[4,512], index: 1, kind: output, shape index: {}]
  %s2 = sld [smem:[#allocation0]]
  $region14: #{lambda_forward.1} parent=0
    _
  %s4 = ssub.s32 1, %s2
  %s5 = scalar_select 0, %s4, %s2
  // Predicated region
  $region2: #{lambda_forward.1} parent=0 // pred_check
    _
  $region3: #{lambda_forward.1} parent=0 // pred_check_branch
    %7 = sbr.rel (0) target = $region5
  $region4: #{lambda_forward.1} parent=0 // pred_region
    _
  $region5: #{lambda_forward.1} parent=0 // pred_fallthru
    _
  %v8 = vld [vmem:[%s0] sm:$0xff]
  %v9 = vld [vmem:[%s0 + $0x8] sm:$0xff]
  %v10 = vmul.f32 %v8, 2.0
  %v11 = vmul.f32 %v9, 2.0
  %v12 = vadd.f32 %v10, 1.0
  %v13 = vadd.f32 %v11, 1.0
  %14 = vst [vmem:[%s1] sm:$0xff] %v12
  %15 = vst [vmem:[%s1 + $0x8] sm:$0xff] %v13
  // Predicated region
  $region6: #{lambda_forward.1} parent=0 // pred_check
    _
  $region7: #{lambda_forward.1} parent=0 // pred_check_branch
    %17 = sbr.rel (0) target = $region9
  $region8: #{lambda_forward.1} parent=0 // pred_region
    _
  $region9: #{lambda_forward.1} parent=0 // pred_fallthru
    _
  // Predicated region
  $region10: #{lambda_forward.1} parent=0 // pred_check
    _
  $region11: #{lambda_forward.1} parent=0 // pred_check_branch
    %19 = sbr.rel (0) target = $region13
  $region12: #{lambda_forward.1} parent=0 // pred_region
    _
  $region13: #{lambda_forward.1} parent=0 // pred_fallthru
    _

</llo_original>
